<compile_context>
chip_gen: v5e
topology: v5e:2x2
jax: 0.10.0
libtpu: 0.0.40
codegen_flags: <defaults>
</compile_context>

<pallas_src>
import jax
import jax.numpy as jnp
from jax.experimental import pallas as pl
from jax.experimental.pallas import tpu as pltpu

LANE = 128      # TPU lane width (last-dim tiling quantum)
SUBLANE = 16    # bf16 sublane packing quantum (batch-tile multiple)


def _round_up(n, m):
    return (n + m - 1) // m * m


def digitnn_kernel(x_ref, w1_ref, b1_ref, w2_ref, b2_ref, o_ref):
    # Cast x to bf16 *inside* the kernel: x arrives in the caller's dtype, so
    # the wrapper never launches a separate HBM cast pass over the batch.
    x = x_ref[...].astype(w1_ref.dtype)
    # layer1: x @ W1 (bf16 operands, f32 MXU accumulation).
    # MXU-shape note: K=inp / N=hid half-fill the 256x256 MXU on v6e/v7x and
    # fit v5e's 128x128 exactly. The kernel is HBM-bound, so do NOT pad hid --
    # it would add bytes and FLOPs for zero wall-clock gain.
    h = jnp.dot(x, w1_ref[...], preferred_element_type=jnp.float32)
    # bias + ReLU epilogue in f32 on the VPU (v5e VPU has no bf16 math)
    h = jnp.maximum(h + b1_ref[...], 0.0)
    # layer2: re-quantize hidden activations to bf16 so the second matmul also
    # runs at full MXU bf16 rate; accumulate in f32.
    o = jnp.dot(h.astype(w2_ref.dtype), w2_ref[...],
                preferred_element_type=jnp.float32)
    # bias add in f32, store bf16 (lane-dense out_pad=128 -> unmasked vst,
    # half the writeback bytes of an f32 store).
    o_ref[...] = (o + b2_ref[...]).astype(o_ref.dtype)


def prepare_digitnn_params(w1, b1, w2, b2, compute_dtype=jnp.bfloat16):
    """One-time parameter conversion (do at load time, NOT per forward call).

    PyTorch nn.Linear layout in:  w1 [hid, inp], b1 [hid], w2 [out, hid], b2 [out].
    Kernel layout out:            w1_t [inp, hid] bf16, b1 [1, hid] f32,
                                  w2_t [hid, out_pad] bf16 (zero-padded cols),
                                  b2 [1, out_pad] f32, and the true out_dim.
    """
    hid, inp = w1.shape
    out = w2.shape[0]
    out_pad = _round_up(out, LANE)                     # lane-dense output head

    w1_t = jnp.asarray(w1, jnp.float32).T.astype(compute_dtype)   # [inp, hid]
    w2_t = jnp.asarray(w2, jnp.float32).T.astype(compute_dtype)   # [hid, out]
    w2_t = jnp.pad(w2_t, ((0, 0), (0, out_pad - out)))            # zero cols -> inert logits
    b1_2d = jnp.asarray(b1, jnp.float32).reshape(1, hid)
    b2_2d = jnp.pad(jnp.asarray(b2, jnp.float32).reshape(1, out),
                    ((0, 0), (0, out_pad - out)))
    return w1_t, b1_2d, w2_t, b2_2d, out


def digitnn_forward(x, params, *, block_b=2048):
    """x: [B, inp] float array. params: output of prepare_digitnn_params."""
    w1_t, b1, w2_t, b2, out_dim = params
    B, inp = x.shape
    hid = w1_t.shape[1]
    out_pad = w2_t.shape[1]

    # Batch tiling: split B as evenly as possible into tiles that are
    #   * multiples of 16 rows (bf16 output sublane packing),
    #   * at most ~block_b rows (f32 x tile + bf16 out tile, double-buffered,
    #     plus resident weights is ~5 MiB at tb=2048 -- far under every
    #     generation's VMEM),
    #   * and, whenever B allows it, >= 2 tiles so the "parallel" batch axis
    #     actually shards across v7x's two TensorCores.
    num_tiles = max(1, pl.cdiv(B, block_b))
    if B > SUBLANE:
        num_tiles = max(num_tiles, 2)
    tb = _round_up(pl.cdiv(B, num_tiles), SUBLANE)
    grid = (pl.cdiv(B, tb),)
    # No jnp.pad on x: an uneven last tile is handled by Pallas (clipped input
    # DMA, masked output writeback), avoiding a full extra HBM copy of x.

    cost = pl.CostEstimate(
        flops=2 * grid[0] * tb * (inp * hid + hid * out_pad),
        transcendentals=0,
        bytes_accessed=(x.size * x.dtype.itemsize
                        + w1_t.size * w1_t.dtype.itemsize
                        + w2_t.size * w2_t.dtype.itemsize
                        + b1.size * 4 + b2.size * 4
                        + B * out_pad * 2),
    )

    out_padded = pl.pallas_call(
        digitnn_kernel,
        out_shape=jax.ShapeDtypeStruct((B, out_pad), jnp.bfloat16),
        grid=grid,
        in_specs=[
            pl.BlockSpec((tb, inp), lambda i: (i, 0)),        # x: tiled over batch
            # Weights/biases: constant index_map -> fetched once, VMEM-resident
            # across grid steps. (pl.Buffered(1) single-buffering intentionally
            # omitted: ~96 KiB saving only, not worth any lowering risk.)
            pl.BlockSpec((inp, hid), lambda i: (0, 0)),       # W1
            pl.BlockSpec((1, hid), lambda i: (0, 0)),         # b1
            pl.BlockSpec((hid, out_pad), lambda i: (0, 0)),   # W2
            pl.BlockSpec((1, out_pad), lambda i: (0, 0)),     # b2
        ],
        out_specs=pl.BlockSpec((tb, out_pad), lambda i: (i, 0)),
        compiler_params=pltpu.CompilerParams(
            dimension_semantics=("parallel",)),  # shard batch tiles across v7x's 2 TCs
        cost_estimate=cost,
    )(x, w1_t, b1, w2_t, b2)

    # Strip the zero-padded logit columns; upcast the small [B, out] slice to
    # f32 for downstream use (the padded slab itself stays bf16 in HBM).
    return out_padded[:, :out_dim].astype(jnp.float32)


def _torch_linear_init(key, out_features, in_features, dtype=jnp.float32):
    """Deterministic init mimicking torch.nn.Linear defaults: U(-k, k), k=1/sqrt(in)."""
    kw, kb = jax.random.split(key)
    bound = 1.0 / (in_features ** 0.5)
    w = jax.random.uniform(kw, (out_features, in_features), dtype,
                           minval=-bound, maxval=bound)
    b = jax.random.uniform(kb, (out_features,), dtype,
                           minval=-bound, maxval=bound)
    return w, b


if __name__ == "__main__":
    # Small MNIST-like shapes: batch=32, inp_dim=256, hid_dim=128, out_dim=10
    B, INP, HID, OUT = 32, 256, 128, 10

    key = jax.random.PRNGKey(0)
    kx, k1, k2 = jax.random.split(key, 3)

    x = jax.random.normal(kx, (B, INP), dtype=jnp.float32)
    w1, b1 = _torch_linear_init(k1, HID, INP)
    w2, b2 = _torch_linear_init(k2, OUT, HID)

    # One-time parameter prep (transpose / pad / cast) outside the forward path.
    params = prepare_digitnn_params(w1, b1, w2, b2)

    y = digitnn_forward(x, params)
    y = jax.block_until_ready(y)

    # Reference with the same quantization points as the kernel: bf16 inputs,
    # weights, hidden activations, and final bf16 output store; f32 accumulation.
    xb = x.astype(jnp.bfloat16).astype(jnp.float32)
    w1b = w1.astype(jnp.bfloat16).astype(jnp.float32)
    w2b = w2.astype(jnp.bfloat16).astype(jnp.float32)
    h_ref = jnp.maximum(xb @ w1b.T + b1, 0.0)
    h_ref = h_ref.astype(jnp.bfloat16).astype(jnp.float32)
    ref = (h_ref @ w2b.T + b2).astype(jnp.bfloat16).astype(jnp.float32)

    assert y.shape == (B, OUT)
    assert y.dtype == jnp.float32
    max_err = float(jnp.max(jnp.abs(y - ref)))
    assert jnp.allclose(y, ref, atol=2e-2, rtol=2e-2), max_err

    print("KERNEL_OK")
</pallas_src>

<mosaic_0001>
module attributes {stable_mosaic.version = 11 : i64} {
  func.func @digitnn_kernel(%arg0: i32, %arg1: memref<16x256xf32, #tpu.memory_space<vmem>>, %arg2: memref<256x128xbf16, #tpu.memory_space<vmem>>, %arg3: memref<1x128xf32, #tpu.memory_space<vmem>>, %arg4: memref<128x128xbf16, #tpu.memory_space<vmem>>, %arg5: memref<1x128xf32, #tpu.memory_space<vmem>>, %arg6: memref<16x128xbf16, #tpu.memory_space<vmem>>) attributes {dimension_semantics = [#tpu.dimension_semantics<parallel>], iteration_bounds = array<i64: 2>, scalar_prefetch = 0 : i64, scratch_operands = 0 : i64, tpu.core_type = #tpu.core_type<tc>, window_params = [{transform_indices = @transform_0, window_bounds = array<i64: 16, 256>}, {pipeline_mode = #tpu.pipeline_mode<synchronous>, transform_indices = @transform_1, window_bounds = array<i64: 256, 128>}, {pipeline_mode = #tpu.pipeline_mode<synchronous>, transform_indices = @transform_2, window_bounds = array<i64: 1, 128>}, {pipeline_mode = #tpu.pipeline_mode<synchronous>, transform_indices = @transform_3, window_bounds = array<i64: 128, 128>}, {pipeline_mode = #tpu.pipeline_mode<synchronous>, transform_indices = @transform_4, window_bounds = array<i64: 1, 128>}, {transform_indices = @transform_5, window_bounds = array<i64: 16, 128>}]} {
    %c0 = arith.constant 0 : index
    %c0_0 = arith.constant 0 : index
    %0 = vector.load %arg1[%c0, %c0_0] : memref<16x256xf32, #tpu.memory_space<vmem>>, vector<16x256xf32>
    %1 = arith.truncf %0 : vector<16x256xf32> to vector<16x256xbf16>
    %c0_1 = arith.constant 0 : index
    %c0_2 = arith.constant 0 : index
    %2 = vector.load %arg2[%c0_1, %c0_2] : memref<256x128xbf16, #tpu.memory_space<vmem>>, vector<256x128xbf16>
    %cst = arith.constant dense<0.000000e+00> : vector<16x128xf32>
    %3 = tpu.matmul %1, %2, %cst {dimension_numbers = #tpu.dot_dimension_numbers<[1], [0], [0], [1], [0, 0, 1, 1], [], []>} : vector<16x256xbf16>, vector<256x128xbf16>, vector<16x128xf32> -> vector<16x128xf32>
    %c0_3 = arith.constant 0 : index
    %c0_4 = arith.constant 0 : index
    %4 = vector.load %arg3[%c0_3, %c0_4] : memref<1x128xf32, #tpu.memory_space<vmem>>, vector<1x128xf32>
    %5 = vector.broadcast %4 : vector<1x128xf32> to vector<16x128xf32>
    %6 = arith.addf %3, %5 : vector<16x128xf32>
    %cst_5 = arith.constant 0.000000e+00 : f32
    %7 = vector.broadcast %cst_5 : f32 to vector<16x128xf32>
    %8 = arith.maximumf %6, %7 : vector<16x128xf32>
    %9 = arith.truncf %8 : vector<16x128xf32> to vector<16x128xbf16>
    %c0_6 = arith.constant 0 : index
    %c0_7 = arith.constant 0 : index
    %10 = vector.load %arg4[%c0_6, %c0_7] : memref<128x128xbf16, #tpu.memory_space<vmem>>, vector<128x128xbf16>
    %cst_8 = arith.constant dense<0.000000e+00> : vector<16x128xf32>
    %11 = tpu.matmul %9, %10, %cst_8 {dimension_numbers = #tpu.dot_dimension_numbers<[1], [0], [0], [1], [0, 0, 1, 1], [], []>} : vector<16x128xbf16>, vector<128x128xbf16>, vector<16x128xf32> -> vector<16x128xf32>
    %c0_9 = arith.constant 0 : index
    %c0_10 = arith.constant 0 : index
    %12 = vector.load %arg5[%c0_9, %c0_10] : memref<1x128xf32, #tpu.memory_space<vmem>>, vector<1x128xf32>
    %13 = vector.broadcast %12 : vector<1x128xf32> to vector<16x128xf32>
    %14 = arith.addf %11, %13 : vector<16x128xf32>
    %15 = arith.truncf %14 : vector<16x128xf32> to vector<16x128xbf16>
    %c0_11 = arith.constant 0 : index
    %c0_12 = arith.constant 0 : index
    %16 = vector.load %arg6[%c0_11, %c0_12] : memref<16x128xbf16, #tpu.memory_space<vmem>>, vector<16x128xbf16>
    tpu.vector_store %arg6[%c0_11, %c0_12], %15 {strides = array<i32>} : memref<16x128xbf16, #tpu.memory_space<vmem>>, vector<16x128xbf16>,
    return
  }
  func.func @transform_0(%arg0: i32) -> (i32, i32) {
    %c0_i32 = arith.constant 0 : i32
    %c0_i32_0 = arith.constant 0 : i32
    return %arg0, %c0_i32 : i32, i32
  }
  func.func @transform_1(%arg0: i32) -> (i32, i32) {
    %c0_i32 = arith.constant 0 : i32
    %c0_i32_0 = arith.constant 0 : i32
    %c0_i32_1 = arith.constant 0 : i32
    return %c0_i32, %c0_i32_0 : i32, i32
  }
  func.func @transform_2(%arg0: i32) -> (i32, i32) {
    %c0_i32 = arith.constant 0 : i32
    %c0_i32_0 = arith.constant 0 : i32
    %c0_i32_1 = arith.constant 0 : i32
    return %c0_i32, %c0_i32_0 : i32, i32
  }
  func.func @transform_3(%arg0: i32) -> (i32, i32) {
    %c0_i32 = arith.constant 0 : i32
    %c0_i32_0 = arith.constant 0 : i32
    %c0_i32_1 = arith.constant 0 : i32
    return %c0_i32, %c0_i32_0 : i32, i32
  }
  func.func @transform_4(%arg0: i32) -> (i32, i32) {
    %c0_i32 = arith.constant 0 : i32
    %c0_i32_0 = arith.constant 0 : i32
    %c0_i32_1 = arith.constant 0 : i32
    return %c0_i32, %c0_i32_0 : i32, i32
  }
  func.func @transform_5(%arg0: i32) -> (i32, i32) {
    %c0_i32 = arith.constant 0 : i32
    %c0_i32_0 = arith.constant 0 : i32
    return %arg0, %c0_i32 : i32, i32
  }
}

</mosaic_0001>

<llo_original>
// kernel: tpu_custom_call.1
$region0: #{tpu_custom_call.1}
  #allocation0 [shape = 'u32[]', space=smem, size = 0x4, offset = 0x4, fixed_abs, tag = 'smem constant byte address 0x4 - core index']
  #allocation1 [shape = 'u32[72,128]{1,0:T(1,128)}', space=vmem, size = 0x9000, scoped, tag = 'internal scratch']
  %s0 = inlined_call_operand.hbm [shape: f32[32,256], index: 0, kind: input, shape index: {}]
  %s1 = inlined_call_operand.hbm [shape: bf16[256,128], index: 1, kind: input, shape index: {}]
  %s2 = inlined_call_operand.vmem [shape: f32[1,128], index: 2, kind: input, shape index: {}]
  %s3 = inlined_call_operand.hbm [shape: bf16[128,128], index: 3, kind: input, shape index: {}]
  %s4 = inlined_call_operand.vmem [shape: f32[1,128], index: 4, kind: input, shape index: {}]
  %s5 = inlined_call_operand.hbm [shape: bf16[32,128], index: 5, kind: output, shape index: {}]
  %s6 = sld [smem:[#allocation0]]
  $region65: #{tpu_custom_call.1} parent=0
    _
  %s8 = ssub.s32 1, %s6
  %s9 = scalar_select 0, %s8, %s6
  $region1: #{tpu_custom_call.1} parent=0
    #allocation2 [shape = 'u8[32768]{0}', space=vmem, size = 0x8000, scoped, tag = 'input window, operand 0']
    #allocation3 [shape = 's32[2]{0}', space=sflag, size = 0x8, scoped, tag = 'scoped memory for tpu_custom_call.1']
    #allocation4 [shape = 's32[2]{0}', space=sflag, size = 0x8, scoped, tag = 'scoped memory for tpu_custom_call.1']
    #allocation5 [shape = 'u8[65536]{0}', space=vmem, size = 0x10000, scoped, tag = 'input window, operand 1, single buffered']
    #allocation6 [shape = 's32[1]{0}', space=sflag, size = 0x4, scoped, tag = 'scoped memory for tpu_custom_call.1']
    #allocation7 [shape = 'u8[32768]{0}', space=vmem, size = 0x8000, scoped, tag = 'input window, operand 3, single buffered']
    #allocation8 [shape = 'u8[8192]{0}', space=vmem, size = 0x2000, scoped, tag = 'output window, operand 0']
    %10 = vsyncpa [#allocation3], 0
    %s11 = scalar_lea.sflag [#allocation3], 1
    %12 = vsyncpa %s11, 0
    %13 = vsyncpa [#allocation6], 0
    %14 = vsyncpa [#allocation4], 0
    %s15 = scalar_lea.sflag [#allocation4], 1
    %16 = vsyncpa %s15, 0
    loop: start=0, step=1, limit=4
    $region2: #{tpu_custom_call.1} parent=1 // loop_pre_header
      _
    $region3: #{tpu_custom_call.1} parent=1 // loop_header
      %s18 = sphi 0, %s22
      %p19 = scmp.ge.s32.totalorder %s18, 4
      %s28 = sphi 0, %s30
      %s31 = sphi 0, %s28
      %s32 = sphi 0, %s31
      %s48 = sphi 0, %s32
      %s52 = sphi 0, %s52
      %s54 = sphi 0, %s52
      %s55 = sphi 0, %s54
      %s69 = sphi 0, %s55
      %s73 = sphi 0, %s73
      %s75 = sphi 0, %s73
      %s76 = sphi 0, %s75
      %s90 = sphi 0, %s76
      %s94 = sphi 0, %s94
      %s96 = sphi 0, %s94
      %s97 = sphi 0, %s96
      %s111 = sphi 0, %s97
      %s115 = sphi 0, %s115
      %s117 = sphi 0, %s115
      %s118 = sphi 0, %s117
      %s132 = sphi 0, %s118
      %s138 = sphi 0, %s140
      %s141 = sphi 0, %s138
      %s142 = sphi 0, %s141
      %s158 = sphi 0, %s142
    $region4: #{tpu_custom_call.1} parent=1 // loop_header_branch
      %21 = sbr.rel (%p19) target = $region8
    $region5: #{tpu_custom_call.1} parent=1 // loop_body
      %s23 = ssub.s32 %s18, 1
      %s24 = ssub.s32 %s18, 2
      %s25 = sadd.s32 %s18, 1
      %s26 = ssub.s32 %s18, %s25
      %p27 = scmp.eq.s32.totalorder %s26, 0
      %s29 = sadd.s32 %s28, 1
      %s30 = scalar_select %p27, %s28, %s29
      %p33 = pneg %p27
      %p34 = scmp.eq.s32.totalorder %s18, 1
      %p35 = por %p33, %p34
      %p36 = scmp.ne.s32.totalorder %s28, %s31
      %p37 = scmp.eq.s32.totalorder %s18, 0
      %p38 = por %p36, %p37
      %p39 = scmp.ne.s32.totalorder %s28, %s31
      %p40 = scmp.eq.s32.totalorder %s23, 1
      %p41 = por %p39, %p40
      %p42 = scmp.ne.s32.totalorder %s31, %s32
      %p43 = scmp.eq.s32.totalorder %s23, 0
      %p44 = por %p42, %p43
      %p45 = scmp.ne.s32.totalorder %s31, %s32
      %p46 = scmp.eq.s32.totalorder %s24, 1
      %p47 = por %p45, %p46
      %p49 = scmp.ne.s32.totalorder %s32, %s48
      %p50 = scmp.eq.s32.totalorder %s24, 0
      %p51 = por %p49, %p50
      %s53 = sadd.s32 %s52, 1
      %p56 = scmp.eq.s32.totalorder %s18, 1
      %p57 = scmp.ne.s32.totalorder %s52, %s54
      %p58 = scmp.eq.s32.totalorder %s18, 0
      %p59 = por %p57, %p58
      %p60 = scmp.ne.s32.totalorder %s52, %s54
      %p61 = scmp.eq.s32.totalorder %s23, 1
      %p62 = por %p60, %p61
      %p63 = scmp.ne.s32.totalorder %s54, %s55
      %p64 = scmp.eq.s32.totalorder %s23, 0
      %p65 = por %p63, %p64
      %p66 = scmp.ne.s32.totalorder %s54, %s55
      %p67 = scmp.eq.s32.totalorder %s24, 1
      %p68 = por %p66, %p67
      %p70 = scmp.ne.s32.totalorder %s55, %s69
      %p71 = scmp.eq.s32.totalorder %s24, 0
      %p72 = por %p70, %p71
      %s74 = sadd.s32 %s73, 1
      %p77 = scmp.eq.s32.totalorder %s18, 1
      %p78 = scmp.ne.s32.totalorder %s73, %s75
      %p79 = scmp.eq.s32.totalorder %s18, 0
      %p80 = por %p78, %p79
      %p81 = scmp.ne.s32.totalorder %s73, %s75
      %p82 = scmp.eq.s32.totalorder %s23, 1
      %p83 = por %p81, %p82
      %p84 = scmp.ne.s32.totalorder %s75, %s76
      %p85 = scmp.eq.s32.totalorder %s23, 0
      %p86 = por %p84, %p85
      %p87 = scmp.ne.s32.totalorder %s75, %s76
      %p88 = scmp.eq.s32.totalorder %s24, 1
      %p89 = por %p87, %p88
      %p91 = scmp.ne.s32.totalorder %s76, %s90
      %p92 = scmp.eq.s32.totalorder %s24, 0
      %p93 = por %p91, %p92
      %s95 = sadd.s32 %s94, 1
      %p98 = scmp.eq.s32.totalorder %s18, 1
      %p99 = scmp.ne.s32.totalorder %s94, %s96
      %p100 = scmp.eq.s32.totalorder %s18, 0
      %p101 = por %p99, %p100
      %p102 = scmp.ne.s32.totalorder %s94, %s96
      %p103 = scmp.eq.s32.totalorder %s23, 1
      %p104 = por %p102, %p103
      %p105 = scmp.ne.s32.totalorder %s96, %s97
      %p106 = scmp.eq.s32.totalorder %s23, 0
      %p107 = por %p105, %p106
      %p108 = scmp.ne.s32.totalorder %s96, %s97
      %p109 = scmp.eq.s32.totalorder %s24, 1
      %p110 = por %p108, %p109
      %p112 = scmp.ne.s32.totalorder %s97, %s111
      %p113 = scmp.eq.s32.totalorder %s24, 0
      %p114 = por %p112, %p113
      %s116 = sadd.s32 %s115, 1
      %p119 = scmp.eq.s32.totalorder %s18, 1
      %p120 = scmp.ne.s32.totalorder %s115, %s117
      %p121 = scmp.eq.s32.totalorder %s18, 0
      %p122 = por %p120, %p121
      %p123 = scmp.ne.s32.totalorder %s115, %s117
      %p124 = scmp.eq.s32.totalorder %s23, 1
      %p125 = por %p123, %p124
      %p126 = scmp.ne.s32.totalorder %s117, %s118
      %p127 = scmp.eq.s32.totalorder %s23, 0
      %p128 = por %p126, %p127
      %p129 = scmp.ne.s32.totalorder %s117, %s118
      %p130 = scmp.eq.s32.totalorder %s24, 1
      %p131 = por %p129, %p130
      %p133 = scmp.ne.s32.totalorder %s118, %s132
      %p134 = scmp.eq.s32.totalorder %s24, 0
      %p135 = por %p133, %p134
      %s136 = ssub.s32 %s18, %s25
      %p137 = scmp.eq.s32.totalorder %s136, 0
      %s139 = sadd.s32 %s138, 1
      %s140 = scalar_select %p137, %s138, %s139
      %p143 = pneg %p137
      %p144 = scmp.eq.s32.totalorder %s18, 1
      %p145 = por %p143, %p144
      %p146 = scmp.ne.s32.totalorder %s138, %s141
      %p147 = scmp.eq.s32.totalorder %s18, 0
      %p148 = por %p146, %p147
      %p149 = scmp.ne.s32.totalorder %s138, %s141
      %p150 = scmp.eq.s32.totalorder %s23, 1
      %p151 = por %p149, %p150
      %p152 = scmp.ne.s32.totalorder %s141, %s142
      %p153 = scmp.eq.s32.totalorder %s23, 0
      %p154 = por %p152, %p153
      %p155 = scmp.ne.s32.totalorder %s141, %s142
      %p156 = scmp.eq.s32.totalorder %s24, 1
      %p157 = por %p155, %p156
      %p159 = scmp.ne.s32.totalorder %s142, %s158
      %p160 = scmp.eq.s32.totalorder %s24, 0
      %p161 = por %p159, %p160
      %p162 = scmp.le.s32.totalorder 1, %s18
      %p163 = scmp.lt.s32.totalorder %s18, 3
      %p164 = pnand %p162, %p163
      %p165 = pneg %p164
      // Predicated region
      $region9: #{tpu_custom_call.1} parent=5 // pred_check
        _
      $region10: #{tpu_custom_call.1} parent=5 // pred_check_branch
        %167 = sbr.rel (%p164) target = $region12
      $region11: #{tpu_custom_call.1} parent=5 // pred_region
        %s168 = ssub.s32 %s18, 1
        // Predicated region
        $region13: #{tpu_custom_call.1} parent=11 // pred_check
          %p169 = pneg %p65
        $region14: #{tpu_custom_call.1} parent=11 // pred_check_branch
          %171 = sbr.rel (%p169) target = $region16
        $region15: #{tpu_custom_call.1} parent=11 // pred_region
          %173 = vsyncadd [#allocation6], 0
          %s174 = sshll.u32 %s1, 4
          %s175 = int_to_ptr.hbm [resolvable:$true] %s174
          %s176 = sshll.u32 [#allocation5], 4
          %s177 = int_to_ptr.vmem [resolvable:$true] %s176
          %182 = dma.hbm_to_vmem [thread:$0]  %s175, 2048, %s177, [#allocation6], 64, 64, 4
        $region16: #{tpu_custom_call.1} parent=11 // pred_fallthru
          _
        // Predicated region
        $region17: #{tpu_custom_call.1} parent=11 // pred_check
          %p183 = pneg %p86
        $region18: #{tpu_custom_call.1} parent=11 // pred_check_branch
          %185 = sbr.rel (%p183) target = $region20
        $region19: #{tpu_custom_call.1} parent=11 // pred_region
          _
        $region20: #{tpu_custom_call.1} parent=11 // pred_fallthru
          _
        // Predicated region
        $region21: #{tpu_custom_call.1} parent=11 // pred_check
          %p186 = pneg %p107
        $region22: #{tpu_custom_call.1} parent=11 // pred_check_branch
          %188 = sbr.rel (%p186) target = $region24
        $region23: #{tpu_custom_call.1} parent=11 // pred_region
          %190 = vsyncadd [#allocation6], 0
          %s191 = sshll.u32 %s3, 4
          %s192 = int_to_ptr.hbm [resolvable:$true] %s191
          %s193 = sshll.u32 [#allocation7], 4
          %s194 = int_to_ptr.vmem [resolvable:$true] %s193
          %199 = dma.hbm_to_vmem [thread:$0]  %s192, 1024, %s194, [#allocation6], 64, 64, 4
        $region24: #{tpu_custom_call.1} parent=11 // pred_fallthru
          _
        // Predicated region
        $region25: #{tpu_custom_call.1} parent=11 // pred_check
          %p200 = pneg %p128
        $region26: #{tpu_custom_call.1} parent=11 // pred_check_branch
          %202 = sbr.rel (%p200) target = $region28
        $region27: #{tpu_custom_call.1} parent=11 // pred_region
          _
        $region28: #{tpu_custom_call.1} parent=11 // pred_fallthru
          _
      $region12: #{tpu_custom_call.1} parent=5 // pred_fallthru
        _
      %p203 = scmp.lt.s32.totalorder %s18, 2
      // Predicated region
      $region29: #{tpu_custom_call.1} parent=5 // pred_check
        %p204 = pneg %p203
      $region30: #{tpu_custom_call.1} parent=5 // pred_check_branch
        %206 = sbr.rel (%p204) target = $region32
      $region31: #{tpu_custom_call.1} parent=5 // pred_region
        // Predicated region
        $region33: #{tpu_custom_call.1} parent=31 // pred_check
          %p207 = pneg %p38
        $region34: #{tpu_custom_call.1} parent=31 // pred_check_branch
          %209 = sbr.rel (%p207) target = $region36
        $region35: #{tpu_custom_call.1} parent=31 // pred_region
          %s210 = sand.u32 %s28, 1
          %s211 = scalar_lea.sflag [#allocation3], %s210
          %s212 = sand.u32 %s28, 1
          %s213 = smul.addr %s212, 32
          %s214 = scalar_lea.vmem [#allocation2], %s213
          %s215 = smul.u32 2, %s18
          %217 = vsyncadd %s211, 0
          %s218 = smul.addr %s215, 2
          %s219 = smul.addr %s218, 8
          %s220 = scalar_lea.hbm %s0, %s219
          %s221 = sshll.u32 %s220, 4
          %s222 = int_to_ptr.hbm [resolvable:$true] %s221
          %s223 = sshll.u32 %s214, 4
          %s224 = int_to_ptr.vmem [resolvable:$true] %s223
          %229 = dma.hbm_to_vmem [thread:$0]  %s222, 512, %s224, %s211, 256, 256, 16
        $region36: #{tpu_custom_call.1} parent=31 // pred_fallthru
          _
      $region32: #{tpu_custom_call.1} parent=5 // pred_fallthru
        _
      %p230 = scmp.le.s32.totalorder 1, %s18
      %p231 = scmp.lt.s32.totalorder %s18, 3
      %p232 = pnand %p230, %p231
      %p233 = pneg %p232
      // Predicated region
      $region37: #{tpu_custom_call.1} parent=5 // pred_check
        _
      $region38: #{tpu_custom_call.1} parent=5 // pred_check_branch
        %235 = sbr.rel (%p232) target = $region40
      $region39: #{tpu_custom_call.1} parent=5 // pred_region
        %s236 = ssub.s32 %s18, 1
        %s237 = sand.u32 %s31, 1
        %s238 = scalar_lea.sflag [#allocation3], %s237
        %s239 = sand.u32 %s31, 1
        %s240 = smul.addr %s239, 32
        %s241 = scalar_lea.vmem [#allocation2], %s240
        // Predicated region
        $region41: #{tpu_custom_call.1} parent=39 // pred_check
          %p242 = pneg %p44
        $region42: #{tpu_custom_call.1} parent=39 // pred_check_branch
          %244 = sbr.rel (%p242) target = $region44
        $region43: #{tpu_custom_call.1} parent=39 // pred_region
          %246 = dma.done %s238, 512
        $region44: #{tpu_custom_call.1} parent=39 // pred_fallthru
          _
        // Predicated region
        $region45: #{tpu_custom_call.1} parent=39 // pred_check
          %p247 = pneg %p65
        $region46: #{tpu_custom_call.1} parent=39 // pred_check_branch
          %249 = sbr.rel (%p247) target = $region48
        $region47: #{tpu_custom_call.1} parent=39 // pred_region
          %251 = dma.done [#allocation6], 2048
        $region48: #{tpu_custom_call.1} parent=39 // pred_fallthru
          _
        // Predicated region
        $region49: #{tpu_custom_call.1} parent=39 // pred_check
          %p252 = pneg %p107
        $region50: #{tpu_custom_call.1} parent=39 // pred_check_branch
          %254 = sbr.rel (%p252) target = $region52
        $region51: #{tpu_custom_call.1} parent=39 // pred_region
          %256 = dma.done [#allocation6], 1024
        $region52: #{tpu_custom_call.1} parent=39 // pred_fallthru
          _
        %s257 = sand.u32 %s31, 1
        %s258 = scalar_lea.sflag [#allocation3], %s257
        %s259 = sand.u32 %s31, 1
        %s260 = smul.addr %s259, 32
        %s261 = scalar_lea.vmem [#allocation2], %s260
        %p262 = pneg %p44
        %p263 = pneg %p41
        %p264 = pneg %p65
        %p265 = pneg %p62
        %p266 = pneg %p86
        %p267 = pneg %p83
        %p268 = pneg %p107
        %p269 = pneg %p104
        %p270 = pneg %p128
        %p271 = pneg %p125
        %p272 = pneg %p154
        %p273 = pneg %p151
        %s274 = sand.u32 %s141, 1
        %s275 = scalar_lea.sflag [#allocation4], %s274
        %s276 = sand.u32 %s141, 1
        %s277 = smul.addr %s276, 8
        %s278 = scalar_lea.vmem [#allocation8], %s277
        %s279 = smul.u32 2, %s23
        %s280 = smul.u32 2, %s23
        %v281 = vld [vmem:[%s241] sm:$0xff]
        %v282 = vld [vmem:[%s241 + $0x8] sm:$0xff]
        %v283 = vld [vmem:[%s241 + $0x10] sm:$0xff]
        %v284 = vld [vmem:[%s241 + $0x18] sm:$0xff]
        %v285 = vpack.c.bf16 %v283, %v281
        %v286 = vpack.c.bf16 %v284, %v282
        %v287 = vld [vmem:[#allocation5] sm:$0xf]
        %v288 = vld [vmem:[#allocation5 + $0x4] sm:$0xf]
        %v289 = vld [vmem:[#allocation5 + $0x8] sm:$0xf]
        %v290 = vld [vmem:[#allocation5 + $0xc] sm:$0xf]
        %v291 = vld [vmem:[#allocation5 + $0x10] sm:$0xf]
        %v292 = vld [vmem:[#allocation5 + $0x14] sm:$0xf]
        %v293 = vld [vmem:[#allocation5 + $0x18] sm:$0xf]
        %v294 = vld [vmem:[#allocation5 + $0x1c] sm:$0xf]
        %v295 = vld [vmem:[#allocation5 + $0x20] sm:$0xf]
        %v296 = vld [vmem:[#allocation5 + $0x24] sm:$0xf]
        %v297 = vld [vmem:[#allocation5 + $0x28] sm:$0xf]
        %v298 = vld [vmem:[#allocation5 + $0x2c] sm:$0xf]
        %v299 = vld [vmem:[#allocation5 + $0x30] sm:$0xf]
        %v300 = vld [vmem:[#allocation5 + $0x34] sm:$0xf]
        %v301 = vld [vmem:[#allocation5 + $0x38] sm:$0xf]
        %v302 = vld [vmem:[#allocation5 + $0x3c] sm:$0xf]
        %v303 = vld [vmem:[#allocation5 + $0x40] sm:$0xf]
        %v304 = vld [vmem:[#allocation5 + $0x44] sm:$0xf]
        %v305 = vld [vmem:[#allocation5 + $0x48] sm:$0xf]
        %v306 = vld [vmem:[#allocation5 + $0x4c] sm:$0xf]
        %v307 = vld [vmem:[#allocation5 + $0x50] sm:$0xf]
        %v308 = vld [vmem:[#allocation5 + $0x54] sm:$0xf]
        %v309 = vld [vmem:[#allocation5 + $0x58] sm:$0xf]
        %v310 = vld [vmem:[#allocation5 + $0x5c] sm:$0xf]
        %v311 = vld [vmem:[#allocation5 + $0x60] sm:$0xf]
        %v312 = vld [vmem:[#allocation5 + $0x64] sm:$0xf]
        %v313 = vld [vmem:[#allocation5 + $0x68] sm:$0xf]
        %v314 = vld [vmem:[#allocation5 + $0x6c] sm:$0xf]
        %v315 = vld [vmem:[#allocation5 + $0x70] sm:$0xf]
        %v316 = vld [vmem:[#allocation5 + $0x74] sm:$0xf]
        %v317 = vld [vmem:[#allocation5 + $0x78] sm:$0xf]
        %v318 = vld [vmem:[#allocation5 + $0x7c] sm:$0xf]
        %v319 = vld [vmem:[%s2] sm:$0x1]
        %v321 = vperm.slane %v319, 0
        %v355 = vunpack.c.l.b16 %v287
        %v356 = vunpack.c.l.b16 %v288
        %v357 = vunpack.c.l.b16 %v289
        %v358 = vunpack.c.l.b16 %v290
        %v359 = vunpack.c.l.b16 %v291
        %v360 = vunpack.c.l.b16 %v292
        %v361 = vunpack.c.l.b16 %v293
        %v362 = vunpack.c.l.b16 %v294
        %v363 = vunpack.c.l.b16 %v295
        %v364 = vunpack.c.l.b16 %v296
        %v365 = vunpack.c.l.b16 %v297
        %v366 = vunpack.c.l.b16 %v298
        %v367 = vunpack.c.l.b16 %v299
        %v368 = vunpack.c.l.b16 %v300
        %v369 = vunpack.c.l.b16 %v301
        %v370 = vunpack.c.l.b16 %v302
        %v371 = vunpack.c.l.b16 %v303
        %v372 = vunpack.c.l.b16 %v304
        %v373 = vunpack.c.l.b16 %v305
        %v374 = vunpack.c.l.b16 %v306
        %v375 = vunpack.c.l.b16 %v307
        %v376 = vunpack.c.l.b16 %v308
        %v377 = vunpack.c.l.b16 %v309
        %v378 = vunpack.c.l.b16 %v310
        %v379 = vunpack.c.l.b16 %v311
        %v380 = vunpack.c.l.b16 %v312
        %v381 = vunpack.c.l.b16 %v313
        %v382 = vunpack.c.l.b16 %v314
        %v383 = vunpack.c.l.b16 %v315
        %v384 = vunpack.c.l.b16 %v316
        %v385 = vunpack.c.l.b16 %v317
        %v386 = vunpack.c.l.b16 %v318
        %v387 = vpack.c.b16 %v356, %v355
        %v388 = vpack.c.b16 %v358, %v357
        %v389 = vpack.c.b16 %v360, %v359
        %v390 = vpack.c.b16 %v362, %v361
        %v391 = vpack.c.b16 %v364, %v363
        %v392 = vpack.c.b16 %v366, %v365
        %v393 = vpack.c.b16 %v368, %v367
        %v394 = vpack.c.b16 %v370, %v369
        %v395 = vpack.c.b16 %v372, %v371
        %v396 = vpack.c.b16 %v374, %v373
        %v397 = vpack.c.b16 %v376, %v375
        %v398 = vpack.c.b16 %v378, %v377
        %v399 = vpack.c.b16 %v380, %v379
        %v400 = vpack.c.b16 %v382, %v381
        %v401 = vpack.c.b16 %v384, %v383
        %v402 = vpack.c.b16 %v386, %v385
        %419 = vmatpush.bf16.msra.mxu0 %v394
        %420 = vmatpush.bf16.msra.mxu0 %v393
        %421 = vmatpush.bf16.msra.mxu0 %v392
        %422 = vmatpush.bf16.msra.mxu0 %v391
        %423 = vmatpush.bf16.msra.mxu0 %v390
        %424 = vmatpush.bf16.msra.mxu0 %v389
        %425 = vmatpush.bf16.msra.mxu0 %v388
        %426 = vmatpush.bf16.msra.mxu0 %v387
        %427 = vmatmul.bf16.gmra.mxu0 %v285
        %v428 = vpop.f32.mrf.mxu0
        %v429 = vadd.f32 %v321, %v428
        %v430 = vpop.f32.mrf.mxu0
        %v431 = vadd.f32 %v321, %v430
        %432 = vdwg.mxu0
        %433 = vmatpush.bf16.msra.mxu0 %v402
        %434 = vmatpush.bf16.msra.mxu0 %v401
        %435 = vmatpush.bf16.msra.mxu0 %v400
        %436 = vmatpush.bf16.msra.mxu0 %v399
        %437 = vmatpush.bf16.msra.mxu0 %v398
        %438 = vmatpush.bf16.msra.mxu0 %v397
        %439 = vmatpush.bf16.msra.mxu0 %v396
        %440 = vmatpush.bf16.msra.mxu0 %v395
        %441 = vmatmul.bf16.gmra.mxu0 %v286
        %v442 = vpop.f32.mrf.mxu0
        %v443 = vadd.f32 %v429, %v442
        %v444 = vpop.f32.mrf.mxu0
        %v445 = vadd.f32 %v431, %v444
        %446 = vdwg.mxu0
        %v447 = vmax.f32 %v443, 0.0
        %v448 = vmax.f32 %v445, 0.0
        %v449 = vpack.c.bf16 %v448, %v447
        %v450 = vld [vmem:[#allocation7] sm:$0xf]
        %v451 = vld [vmem:[#allocation7 + $0x4] sm:$0xf]
        %v452 = vld [vmem:[#allocation7 + $0x8] sm:$0xf]
        %v453 = vld [vmem:[#allocation7 + $0xc] sm:$0xf]
        %v454 = vld [vmem:[#allocation7 + $0x10] sm:$0xf]
        %v455 = vld [vmem:[#allocation7 + $0x14] sm:$0xf]
        %v456 = vld [vmem:[#allocation7 + $0x18] sm:$0xf]
        %v457 = vld [vmem:[#allocation7 + $0x1c] sm:$0xf]
        %v458 = vld [vmem:[#allocation7 + $0x20] sm:$0xf]
        %v459 = vld [vmem:[#allocation7 + $0x24] sm:$0xf]
        %v460 = vld [vmem:[#allocation7 + $0x28] sm:$0xf]
        %v461 = vld [vmem:[#allocation7 + $0x2c] sm:$0xf]
        %v462 = vld [vmem:[#allocation7 + $0x30] sm:$0xf]
        %v463 = vld [vmem:[#allocation7 + $0x34] sm:$0xf]
        %v464 = vld [vmem:[#allocation7 + $0x38] sm:$0xf]
        %v465 = vld [vmem:[#allocation7 + $0x3c] sm:$0xf]
        %v466 = vld [vmem:[%s4] sm:$0x1]
        %v468 = vperm.slane %v466, 0
        %v486 = vunpack.c.l.b16 %v450
        %v487 = vunpack.c.l.b16 %v451
        %v488 = vunpack.c.l.b16 %v452
        %v489 = vunpack.c.l.b16 %v453
        %v490 = vunpack.c.l.b16 %v454
        %v491 = vunpack.c.l.b16 %v455
        %v492 = vunpack.c.l.b16 %v456
        %v493 = vunpack.c.l.b16 %v457
        %v494 = vunpack.c.l.b16 %v458
        %v495 = vunpack.c.l.b16 %v459
        %v496 = vunpack.c.l.b16 %v460
        %v497 = vunpack.c.l.b16 %v461
        %v498 = vunpack.c.l.b16 %v462
        %v499 = vunpack.c.l.b16 %v463
        %v500 = vunpack.c.l.b16 %v464
        %v501 = vunpack.c.l.b16 %v465
        %v502 = vpack.c.b16 %v487, %v486
        %v503 = vpack.c.b16 %v489, %v488
        %v504 = vpack.c.b16 %v491, %v490
        %v505 = vpack.c.b16 %v493, %v492
        %v506 = vpack.c.b16 %v495, %v494
        %v507 = vpack.c.b16 %v497, %v496
        %v508 = vpack.c.b16 %v499, %v498
        %v509 = vpack.c.b16 %v501, %v500
        %518 = vmatpush.bf16.msra.mxu0 %v509
        %519 = vmatpush.bf16.msra.mxu0 %v508
        %520 = vmatpush.bf16.msra.mxu0 %v507
        %521 = vmatpush.bf16.msra.mxu0 %v506
        %522 = vmatpush.bf16.msra.mxu0 %v505
        %523 = vmatpush.bf16.msra.mxu0 %v504
        %524 = vmatpush.bf16.msra.mxu0 %v503
        %525 = vmatpush.bf16.msra.mxu0 %v502
        %526 = vmatmul.bf16.gmra.mxu0 %v449
        %v527 = vpop.f32.mrf.mxu0
        %v528 = vadd.f32 %v468, %v527
        %v529 = vpop.f32.mrf.mxu0
        %v530 = vadd.f32 %v468, %v529
        %531 = vdwg.mxu0
        %v532 = vpack.c.bf16 %v528, %v528
        %v533 = vpack.c.bf16 %v530, %v530
        %534 = vst [vmem:[%s278] sm:$0xf] %v532
        %535 = vst [vmem:[%s278 + $0x4] sm:$0xf] %v533
        %s536 = sand.u32 %s141, 1
        %s537 = scalar_lea.sflag [#allocation4], %s536
        %s538 = sand.u32 %s141, 1
        %s539 = smul.addr %s538, 8
        %s540 = scalar_lea.vmem [#allocation8], %s539
        // Predicated region
        $region53: #{tpu_custom_call.1} parent=39 // pred_check
          %p541 = pneg %p151
        $region54: #{tpu_custom_call.1} parent=39 // pred_check_branch
          %543 = sbr.rel (%p541) target = $region56
        $region55: #{tpu_custom_call.1} parent=39 // pred_region
          %s544 = smul.u32 2, %s23
          %546 = vsyncadd %s537, 0
          %s547 = smul.addr %s544, 4
          %s548 = scalar_lea.hbm %s5, %s547
          %s549 = sshll.u32 %s540, 4
          %s550 = int_to_ptr.vmem [resolvable:$true] %s549
          %s551 = sshll.u32 %s548, 4
          %s552 = int_to_ptr.hbm [resolvable:$true] %s551
          %557 = dma.vmem_to_hbm [thread:$0]  %s550, 128, %s552, %s537, 64, 64, 4
        $region56: #{tpu_custom_call.1} parent=39 // pred_fallthru
          _
      $region40: #{tpu_custom_call.1} parent=5 // pred_fallthru
        _
      %p558 = scmp.le.s32.totalorder 2, %s18
      // Predicated region
      $region57: #{tpu_custom_call.1} parent=5 // pred_check
        %p559 = pneg %p558
      $region58: #{tpu_custom_call.1} parent=5 // pred_check_branch
        %561 = sbr.rel (%p559) target = $region60
      $region59: #{tpu_custom_call.1} parent=5 // pred_region
        %s562 = ssub.s32 %s18, 2
        // Predicated region
        $region61: #{tpu_custom_call.1} parent=59 // pred_check
          %p563 = pneg %p157
        $region62: #{tpu_custom_call.1} parent=59 // pred_check_branch
          %565 = sbr.rel (%p563) target = $region64
        $region63: #{tpu_custom_call.1} parent=59 // pred_region
          %s566 = sand.u32 %s142, 1
          %s567 = scalar_lea.sflag [#allocation4], %s566
          %s568 = sand.u32 %s142, 1
          %s569 = smul.addr %s568, 8
          %s570 = scalar_lea.vmem [#allocation8], %s569
          %572 = dma.done %s567, 128
        $region64: #{tpu_custom_call.1} parent=59 // pred_fallthru
          _
      $region60: #{tpu_custom_call.1} parent=5 // pred_fallthru
        _
    $region6: #{tpu_custom_call.1} parent=1 // loop_footer
      %s22 = sadd.s32 1, %s18
    $region7: #{tpu_custom_call.1} parent=1 // loop_footer_branch
      %17 = sbr.rel target = $region3
    $region8: #{tpu_custom_call.1} parent=1 // loop_exit
      _
    %573 = vsyncpa [#allocation3], 1
    %s574 = scalar_lea.sflag [#allocation3], 1
    %575 = vsyncpa %s574, 1
    %576 = vsyncpa [#allocation6], 1
    %577 = vsyncpa [#allocation4], 1
    %s578 = scalar_lea.sflag [#allocation4], 1
    %579 = vsyncpa %s578, 1

</llo_original>
